<compile_context>
chip_gen: v7x
topology: tpu7x:2x2x1
jax: 0.10.0
libtpu: 0.0.40
codegen_flags: <defaults>
</compile_context>

<pallas_src>
import functools

import jax
import jax.numpy as jnp
from jax import lax
from jax.experimental import pallas as pl
from jax.experimental.pallas import tpu as pltpu

_IN_CH = 19        # 3 world_pos + 9 rotation + 3 translation + 4 intrinsics
_OUT_CH = 3        # x, y, depth
_LANES = 128       # points per sublane-row (lane width)
_CHUNK_ROWS = 32   # in-kernel chunk: 32 rows * 128 lanes = 4096 points


def _round_up(x, m):
    return (x + m - 1) // m * m


def _cdiv(a, b):
    return -(-a // b)


def _project_kernel(packed_ref, out_ref, *, chunk_rows, n_chunks):
    """packed_ref: (19, block_rows, 128) f32; out_ref: (3, block_rows, 128) f32."""

    def compute(rows):
        # d = world_position - translation
        d0 = packed_ref[0, rows, :] - packed_ref[12, rows, :]
        d1 = packed_ref[1, rows, :] - packed_ref[13, rows, :]
        d2 = packed_ref[2, rows, :] - packed_ref[14, rows, :]

        # positions = R^T @ d ; packed[3 + 3j + k] holds R[j, k] (row-major)
        p0 = (packed_ref[3, rows, :] * d0 + packed_ref[6, rows, :] * d1
              + packed_ref[9, rows, :] * d2)
        p1 = (packed_ref[4, rows, :] * d0 + packed_ref[7, rows, :] * d1
              + packed_ref[10, rows, :] * d2)
        p2 = (packed_ref[5, rows, :] * d0 + packed_ref[8, rows, :] * d1
              + packed_ref[11, rows, :] * d2)

        neg_z = -p2
        inv = pl.reciprocal(neg_z, approx=False)   # one exact recip, not 2 divides

        fx = packed_ref[15, rows, :]
        fy = packed_ref[16, rows, :]
        cx = packed_ref[17, rows, :]
        cy = packed_ref[18, rows, :]

        out_ref[0, rows, :] = fx * p0 * inv + cx
        out_ref[1, rows, :] = cy - fy * p1 * inv    # == -fy * p1 / neg_z + cy
        out_ref[2, rows, :] = neg_z

    if n_chunks == 1:
        compute(slice(None))                        # tiny block: no dynamic slicing
    else:
        def step(s, carry):
            r0 = pl.multiple_of(s * chunk_rows, chunk_rows)
            compute(pl.ds(r0, chunk_rows))
            return carry
        lax.fori_loop(0, n_chunks, step, 0)


def _choose_blocking(n_points, max_block_rows):
    """Pick (block_rows, rows_total); block_rows divides rows_total and the
    in-kernel chunk (32 rows) divides block_rows."""
    rows_needed = max(1, _cdiv(n_points, _LANES))
    if rows_needed <= _CHUNK_ROWS:
        block_rows = rows_needed                     # one small full-extent block
    else:
        block_rows = min(_round_up(rows_needed, _CHUNK_ROWS), max_block_rows)
        if rows_needed >= 4 * _CHUNK_ROWS:
            # keep >= 4 grid steps when there is enough work so the "parallel"
            # axis can shard across TensorCores (v7x) and the pipeline has depth
            block_rows = min(block_rows,
                             max(_CHUNK_ROWS,
                                 _round_up(_cdiv(rows_needed, 4), _CHUNK_ROWS)))
    rows_total = _round_up(rows_needed, block_rows)
    return block_rows, rows_total


def _pack_channels_first(world_positions, camera_to_worlds, fx, fy, cx, cy,
                         rows_total):
    """Build the channel-major (19, rows_total, 128) slab.

    NOTE: this single concat+pad+transpose pass IS materialised in HBM (it
    cannot fuse into the pallas_call). Supplying this layout upstream removes
    the pass entirely."""
    dtype = jnp.float32
    n = world_positions.shape[0]
    n_padded = rows_total * _LANES

    wp = world_positions.astype(dtype).reshape(n, 3)
    c2w = camera_to_worlds.astype(dtype).reshape(n, 3, 4)
    rot = c2w[:, :, :3].reshape(n, 9)                # row-major R[j, k]
    trans = c2w[:, :, 3]
    intr = jnp.concatenate(
        [jnp.reshape(fx, (n, 1)), jnp.reshape(fy, (n, 1)),
         jnp.reshape(cx, (n, 1)), jnp.reshape(cy, (n, 1))], axis=1).astype(dtype)

    packed = jnp.concatenate([wp, rot, trans, intr], axis=1).T   # (19, N)
    pad = n_padded - n
    if pad:
        # Non-degenerate padding: wp = 0, everything else = 1 -> neg_z = 3 in
        # padded lanes (no 0/0, no inf out of the reciprocal).
        pad_col = jnp.concatenate(
            [jnp.zeros((3, 1), dtype), jnp.ones((_IN_CH - 3, 1), dtype)], axis=0)
        packed = jnp.concatenate(
            [packed, jnp.broadcast_to(pad_col, (_IN_CH, pad))], axis=1)
    return packed.reshape(_IN_CH, rows_total, _LANES)


@functools.partial(jax.jit, static_argnames=("block_rows", "rows_total"))
def _forward_impl(world_positions, camera_to_worlds, fx, fy, cx, cy, *,
                  block_rows, rows_total):
    n = world_positions.shape[0]
    packed = _pack_channels_first(world_positions, camera_to_worlds,
                                  fx, fy, cx, cy, rows_total)

    chunk_rows = min(_CHUNK_ROWS, block_rows)
    n_chunks = block_rows // chunk_rows
    grid = (rows_total // block_rows,)

    kernel = functools.partial(_project_kernel,
                               chunk_rows=chunk_rows, n_chunks=n_chunks)

    out = pl.pallas_call(
        kernel,
        out_shape=jax.ShapeDtypeStruct((_OUT_CH, rows_total, _LANES), jnp.float32),
        grid_spec=pltpu.PrefetchScalarGridSpec(
            num_scalar_prefetch=0,
            grid=grid,
            in_specs=[pl.BlockSpec((_IN_CH, block_rows, _LANES),
                                   lambda i: (0, i, 0))],
            out_specs=pl.BlockSpec((_OUT_CH, block_rows, _LANES),
                                   lambda i: (0, i, 0)),
        ),
        compiler_params=pltpu.CompilerParams(
            dimension_semantics=("parallel",),
            vmem_limit_bytes=32 * 1024 * 1024),
    )(packed)

    # Small channels-first -> (N, 3) epilogue (12 B/pt); consumers that accept
    # the (3, rows, 128) slab can skip it.
    res = out.reshape(_OUT_CH, rows_total * _LANES)[:, :n].T     # (N, 3)
    return res[:, 0:2], res[:, 2:3]


def point_projectors_forward(world_positions, camera_to_worlds, fx, fy, cx, cy,
                             *, max_block_rows=512):
    """world_positions: [N,3]; camera_to_worlds: [N,3,4]; fx/fy/cx/cy: [N,1] or [N]."""
    n = world_positions.shape[0]
    max_block_rows = max(_CHUNK_ROWS,
                         (int(max_block_rows) // _CHUNK_ROWS) * _CHUNK_ROWS)
    block_rows, rows_total = _choose_blocking(n, max_block_rows)
    return _forward_impl(world_positions, camera_to_worlds, fx, fy, cx, cy,
                         block_rows=block_rows, rows_total=rows_total)


def _make_inputs(key, n):
    k1, k2, k3 = jax.random.split(key, 3)
    world_positions = jax.random.normal(k1, (n, 3), jnp.float32)
    ang = jax.random.uniform(k2, (n,), minval=-0.3, maxval=0.3)
    c, s = jnp.cos(ang), jnp.sin(ang)
    z = jnp.zeros_like(c)
    o = jnp.ones_like(c)
    R = jnp.stack([jnp.stack([c, z, s], axis=-1),
                   jnp.stack([z, o, z], axis=-1),
                   jnp.stack([-s, z, c], axis=-1)], axis=1)          # (n, 3, 3)
    t = jax.random.normal(k3, (n, 3), jnp.float32) * 0.3 + jnp.array([0.0, 0.0, 5.0])
    c2w = jnp.concatenate([R, t[:, :, None]], axis=-1)               # (n, 3, 4)
    fx = jnp.full((n, 1), 120.0, jnp.float32)
    fy = jnp.full((n, 1), 110.0, jnp.float32)
    cx = jnp.full((n, 1), 64.0, jnp.float32)
    cy = jnp.full((n, 1), 48.0, jnp.float32)
    return world_positions, R, t, c2w, fx, fy, cx, cy


def _reference(world_positions, R, t, fx, fy, cx, cy):
    pos = jnp.einsum('nij,nj->ni', jnp.swapaxes(R, 1, 2), world_positions - t)
    x_ref = fx[:, 0] * pos[:, 0] / -pos[:, 2] + cx[:, 0]
    y_ref = -fy[:, 0] * pos[:, 1] / -pos[:, 2] + cy[:, 0]
    return jnp.stack([x_ref, y_ref], axis=1), -pos[:, 2:3]


if __name__ == "__main__":
    key = jax.random.PRNGKey(0)
    kA, kB = jax.random.split(key, 2)

    # Small primary example (single block, single in-kernel chunk).
    N = 256
    wp, R, t, c2w, fx, fy, cx, cy = _make_inputs(kA, N)
    ref_pixels, depth = point_projectors_forward(wp, c2w, fx, fy, cx, cy)
    jax.block_until_ready((ref_pixels, depth))

    exp_pix, exp_depth = _reference(wp, R, t, fx, fy, cx, cy)
    assert ref_pixels.shape == (N, 2) and depth.shape == (N, 1)
    assert jnp.allclose(ref_pixels, exp_pix, rtol=1e-4, atol=1e-3)
    assert jnp.allclose(depth, exp_depth, rtol=1e-5, atol=1e-5)

    # Secondary check exercising the multi-block grid + chunked inner loop
    # (N not a multiple of 128, grid > 1, n_chunks > 1).
    N2 = 20000
    wp2, R2, t2, c2w2, fx2, fy2, cx2, cy2 = _make_inputs(kB, N2)
    pix2, depth2 = point_projectors_forward(wp2, c2w2, fx2, fy2, cx2, cy2)
    jax.block_until_ready((pix2, depth2))
    exp_pix2, exp_depth2 = _reference(wp2, R2, t2, fx2, fy2, cx2, cy2)
    assert pix2.shape == (N2, 2) and depth2.shape == (N2, 1)
    assert jnp.allclose(pix2, exp_pix2, rtol=1e-4, atol=1e-3)
    assert jnp.allclose(depth2, exp_depth2, rtol=1e-5, atol=1e-5)

    print("KERNEL_OK")
</pallas_src>

<mosaic_0001>
module attributes {stable_mosaic.version = 11 : i64} {
  func.func @_project_kernel(%arg0: i32, %arg1: memref<19x2x128xf32, #tpu.memory_space<vmem>>, %arg2: memref<3x2x128xf32, #tpu.memory_space<vmem>>) attributes {dimension_semantics = [#tpu.dimension_semantics<parallel>], iteration_bounds = array<i64: 1>, scalar_prefetch = 0 : i64, scratch_operands = 0 : i64, tpu.core_type = #tpu.core_type<tc>, window_params = [{transform_indices = @transform_0, window_bounds = array<i64: 19, 2, 128>}, {transform_indices = @transform_1, window_bounds = array<i64: 3, 2, 128>}]} {
    %c0 = arith.constant 0 : index
    %c0_0 = arith.constant 0 : index
    %c0_1 = arith.constant 0 : index
    %0 = vector.load %arg1[%c0, %c0_0, %c0_1] : memref<19x2x128xf32, #tpu.memory_space<vmem>>, vector<1x2x128xf32>
    %1 = vector.shape_cast %0 : vector<1x2x128xf32> to vector<2x128xf32>
    %c12 = arith.constant 12 : index
    %c0_2 = arith.constant 0 : index
    %c0_3 = arith.constant 0 : index
    %2 = vector.load %arg1[%c12, %c0_2, %c0_3] : memref<19x2x128xf32, #tpu.memory_space<vmem>>, vector<1x2x128xf32>
    %3 = vector.shape_cast %2 : vector<1x2x128xf32> to vector<2x128xf32>
    %4 = arith.subf %1, %3 : vector<2x128xf32>
    %c1 = arith.constant 1 : index
    %c0_4 = arith.constant 0 : index
    %c0_5 = arith.constant 0 : index
    %5 = vector.load %arg1[%c1, %c0_4, %c0_5] : memref<19x2x128xf32, #tpu.memory_space<vmem>>, vector<1x2x128xf32>
    %6 = vector.shape_cast %5 : vector<1x2x128xf32> to vector<2x128xf32>
    %c13 = arith.constant 13 : index
    %c0_6 = arith.constant 0 : index
    %c0_7 = arith.constant 0 : index
    %7 = vector.load %arg1[%c13, %c0_6, %c0_7] : memref<19x2x128xf32, #tpu.memory_space<vmem>>, vector<1x2x128xf32>
    %8 = vector.shape_cast %7 : vector<1x2x128xf32> to vector<2x128xf32>
    %9 = arith.subf %6, %8 : vector<2x128xf32>
    %c2 = arith.constant 2 : index
    %c0_8 = arith.constant 0 : index
    %c0_9 = arith.constant 0 : index
    %10 = vector.load %arg1[%c2, %c0_8, %c0_9] : memref<19x2x128xf32, #tpu.memory_space<vmem>>, vector<1x2x128xf32>
    %11 = vector.shape_cast %10 : vector<1x2x128xf32> to vector<2x128xf32>
    %c14 = arith.constant 14 : index
    %c0_10 = arith.constant 0 : index
    %c0_11 = arith.constant 0 : index
    %12 = vector.load %arg1[%c14, %c0_10, %c0_11] : memref<19x2x128xf32, #tpu.memory_space<vmem>>, vector<1x2x128xf32>
    %13 = vector.shape_cast %12 : vector<1x2x128xf32> to vector<2x128xf32>
    %14 = arith.subf %11, %13 : vector<2x128xf32>
    %c3 = arith.constant 3 : index
    %c0_12 = arith.constant 0 : index
    %c0_13 = arith.constant 0 : index
    %15 = vector.load %arg1[%c3, %c0_12, %c0_13] : memref<19x2x128xf32, #tpu.memory_space<vmem>>, vector<1x2x128xf32>
    %16 = vector.shape_cast %15 : vector<1x2x128xf32> to vector<2x128xf32>
    %17 = arith.mulf %16, %4 : vector<2x128xf32>
    %c6 = arith.constant 6 : index
    %c0_14 = arith.constant 0 : index
    %c0_15 = arith.constant 0 : index
    %18 = vector.load %arg1[%c6, %c0_14, %c0_15] : memref<19x2x128xf32, #tpu.memory_space<vmem>>, vector<1x2x128xf32>
    %19 = vector.shape_cast %18 : vector<1x2x128xf32> to vector<2x128xf32>
    %20 = arith.mulf %19, %9 : vector<2x128xf32>
    %21 = arith.addf %17, %20 : vector<2x128xf32>
    %c9 = arith.constant 9 : index
    %c0_16 = arith.constant 0 : index
    %c0_17 = arith.constant 0 : index
    %22 = vector.load %arg1[%c9, %c0_16, %c0_17] : memref<19x2x128xf32, #tpu.memory_space<vmem>>, vector<1x2x128xf32>
    %23 = vector.shape_cast %22 : vector<1x2x128xf32> to vector<2x128xf32>
    %24 = arith.mulf %23, %14 : vector<2x128xf32>
    %25 = arith.addf %21, %24 : vector<2x128xf32>
    %c4 = arith.constant 4 : index
    %c0_18 = arith.constant 0 : index
    %c0_19 = arith.constant 0 : index
    %26 = vector.load %arg1[%c4, %c0_18, %c0_19] : memref<19x2x128xf32, #tpu.memory_space<vmem>>, vector<1x2x128xf32>
    %27 = vector.shape_cast %26 : vector<1x2x128xf32> to vector<2x128xf32>
    %28 = arith.mulf %27, %4 : vector<2x128xf32>
    %c7 = arith.constant 7 : index
    %c0_20 = arith.constant 0 : index
    %c0_21 = arith.constant 0 : index
    %29 = vector.load %arg1[%c7, %c0_20, %c0_21] : memref<19x2x128xf32, #tpu.memory_space<vmem>>, vector<1x2x128xf32>
    %30 = vector.shape_cast %29 : vector<1x2x128xf32> to vector<2x128xf32>
    %31 = arith.mulf %30, %9 : vector<2x128xf32>
    %32 = arith.addf %28, %31 : vector<2x128xf32>
    %c10 = arith.constant 10 : index
    %c0_22 = arith.constant 0 : index
    %c0_23 = arith.constant 0 : index
    %33 = vector.load %arg1[%c10, %c0_22, %c0_23] : memref<19x2x128xf32, #tpu.memory_space<vmem>>, vector<1x2x128xf32>
    %34 = vector.shape_cast %33 : vector<1x2x128xf32> to vector<2x128xf32>
    %35 = arith.mulf %34, %14 : vector<2x128xf32>
    %36 = arith.addf %32, %35 : vector<2x128xf32>
    %c5 = arith.constant 5 : index
    %c0_24 = arith.constant 0 : index
    %c0_25 = arith.constant 0 : index
    %37 = vector.load %arg1[%c5, %c0_24, %c0_25] : memref<19x2x128xf32, #tpu.memory_space<vmem>>, vector<1x2x128xf32>
    %38 = vector.shape_cast %37 : vector<1x2x128xf32> to vector<2x128xf32>
    %39 = arith.mulf %38, %4 : vector<2x128xf32>
    %c8 = arith.constant 8 : index
    %c0_26 = arith.constant 0 : index
    %c0_27 = arith.constant 0 : index
    %40 = vector.load %arg1[%c8, %c0_26, %c0_27] : memref<19x2x128xf32, #tpu.memory_space<vmem>>, vector<1x2x128xf32>
    %41 = vector.shape_cast %40 : vector<1x2x128xf32> to vector<2x128xf32>
    %42 = arith.mulf %41, %9 : vector<2x128xf32>
    %43 = arith.addf %39, %42 : vector<2x128xf32>
    %c11 = arith.constant 11 : index
    %c0_28 = arith.constant 0 : index
    %c0_29 = arith.constant 0 : index
    %44 = vector.load %arg1[%c11, %c0_28, %c0_29] : memref<19x2x128xf32, #tpu.memory_space<vmem>>, vector<1x2x128xf32>
    %45 = vector.shape_cast %44 : vector<1x2x128xf32> to vector<2x128xf32>
    %46 = arith.mulf %45, %14 : vector<2x128xf32>
    %47 = arith.addf %43, %46 : vector<2x128xf32>
    %cst = arith.constant 0.000000e+00 : f32
    %48 = vector.broadcast %cst : f32 to vector<2x128xf32>
    %49 = arith.subf %48, %47 : vector<2x128xf32>
    %50 = tpu.reciprocal %49 : vector<2x128xf32> -> vector<2x128xf32>
    %c15 = arith.constant 15 : index
    %c0_30 = arith.constant 0 : index
    %c0_31 = arith.constant 0 : index
    %51 = vector.load %arg1[%c15, %c0_30, %c0_31] : memref<19x2x128xf32, #tpu.memory_space<vmem>>, vector<1x2x128xf32>
    %52 = vector.shape_cast %51 : vector<1x2x128xf32> to vector<2x128xf32>
    %c16 = arith.constant 16 : index
    %c0_32 = arith.constant 0 : index
    %c0_33 = arith.constant 0 : index
    %53 = vector.load %arg1[%c16, %c0_32, %c0_33] : memref<19x2x128xf32, #tpu.memory_space<vmem>>, vector<1x2x128xf32>
    %54 = vector.shape_cast %53 : vector<1x2x128xf32> to vector<2x128xf32>
    %c17 = arith.constant 17 : index
    %c0_34 = arith.constant 0 : index
    %c0_35 = arith.constant 0 : index
    %55 = vector.load %arg1[%c17, %c0_34, %c0_35] : memref<19x2x128xf32, #tpu.memory_space<vmem>>, vector<1x2x128xf32>
    %56 = vector.shape_cast %55 : vector<1x2x128xf32> to vector<2x128xf32>
    %c18 = arith.constant 18 : index
    %c0_36 = arith.constant 0 : index
    %c0_37 = arith.constant 0 : index
    %57 = vector.load %arg1[%c18, %c0_36, %c0_37] : memref<19x2x128xf32, #tpu.memory_space<vmem>>, vector<1x2x128xf32>
    %58 = vector.shape_cast %57 : vector<1x2x128xf32> to vector<2x128xf32>
    %59 = arith.mulf %52, %25 : vector<2x128xf32>
    %60 = arith.mulf %59, %50 : vector<2x128xf32>
    %61 = arith.addf %60, %56 : vector<2x128xf32>
    %c0_38 = arith.constant 0 : index
    %c0_39 = arith.constant 0 : index
    %c0_40 = arith.constant 0 : index
    %62 = vector.load %arg2[%c0_38, %c0_39, %c0_40] : memref<3x2x128xf32, #tpu.memory_space<vmem>>, vector<1x2x128xf32>
    %63 = vector.shape_cast %62 : vector<1x2x128xf32> to vector<2x128xf32>
    %64 = vector.shape_cast %61 : vector<2x128xf32> to vector<1x2x128xf32>
    tpu.vector_store %arg2[%c0_38, %c0_39, %c0_40], %64 {strides = array<i32>} : memref<3x2x128xf32, #tpu.memory_space<vmem>>, vector<1x2x128xf32>,
    %65 = arith.mulf %54, %36 : vector<2x128xf32>
    %66 = arith.mulf %65, %50 : vector<2x128xf32>
    %67 = arith.subf %58, %66 : vector<2x128xf32>
    %c1_41 = arith.constant 1 : index
    %c0_42 = arith.constant 0 : index
    %c0_43 = arith.constant 0 : index
    %68 = vector.load %arg2[%c1_41, %c0_42, %c0_43] : memref<3x2x128xf32, #tpu.memory_space<vmem>>, vector<1x2x128xf32>
    %69 = vector.shape_cast %68 : vector<1x2x128xf32> to vector<2x128xf32>
    %70 = vector.shape_cast %67 : vector<2x128xf32> to vector<1x2x128xf32>
    tpu.vector_store %arg2[%c1_41, %c0_42, %c0_43], %70 {strides = array<i32>} : memref<3x2x128xf32, #tpu.memory_space<vmem>>, vector<1x2x128xf32>,
    %c2_44 = arith.constant 2 : index
    %c0_45 = arith.constant 0 : index
    %c0_46 = arith.constant 0 : index
    %71 = vector.load %arg2[%c2_44, %c0_45, %c0_46] : memref<3x2x128xf32, #tpu.memory_space<vmem>>, vector<1x2x128xf32>
    %72 = vector.shape_cast %71 : vector<1x2x128xf32> to vector<2x128xf32>
    %73 = vector.shape_cast %49 : vector<2x128xf32> to vector<1x2x128xf32>
    tpu.vector_store %arg2[%c2_44, %c0_45, %c0_46], %73 {strides = array<i32>} : memref<3x2x128xf32, #tpu.memory_space<vmem>>, vector<1x2x128xf32>,
    return
  }
  func.func @transform_0(%arg0: i32) -> (i32, i32, i32) {
    %c0_i32 = arith.constant 0 : i32
    %c0_i32_0 = arith.constant 0 : i32
    %c0_i32_1 = arith.constant 0 : i32
    return %c0_i32, %arg0, %c0_i32_0 : i32, i32, i32
  }
  func.func @transform_1(%arg0: i32) -> (i32, i32, i32) {
    %c0_i32 = arith.constant 0 : i32
    %c0_i32_0 = arith.constant 0 : i32
    %c0_i32_1 = arith.constant 0 : i32
    return %c0_i32, %arg0, %c0_i32_0 : i32, i32, i32
  }
}

</mosaic_0001>

<llo_original>
// kernel: _forward_impl.1
$region0: #{_forward_impl.1}
  #allocation0 [shape = 'u32[]', space=smem, size = 0x4, offset = 0x4, fixed_abs, tag = 'smem constant byte address 0x4 - core index']
  #allocation1 [shape = 'u32[144,128]{1,0:T(1,128)}', space=vmem, size = 0x12000, scoped, tag = 'internal scratch']
  %s0 = inlined_call_operand.vmem [shape: f32[19,2,128], index: 0, kind: input, shape index: {}]
  %s1 = inlined_call_operand.vmem [shape: f32[3,2,128], index: 1, kind: output, shape index: {}]
  %s2 = sld [smem:[#allocation0]]
  $region14: #{_forward_impl.1} parent=0
    _
  %s4 = ssub.s32 1, %s2
  %s5 = scalar_select 0, %s4, %s2
  // Predicated region
  $region2: #{_forward_impl.1} parent=0 // pred_check
    _
  $region3: #{_forward_impl.1} parent=0 // pred_check_branch
    %7 = sbr.rel (0) target = $region5
  $region4: #{_forward_impl.1} parent=0 // pred_region
    _
  $region5: #{_forward_impl.1} parent=0 // pred_fallthru
    _
  %v8 = vld [vmem:[%s0] sm:$0x3]
  %s9 = scalar_lea.vmem %s0, 24
  %v10 = vld [vmem:[%s9] sm:$0x3]
  %v11 = vsub.f32 %v8, %v10
  %s12 = scalar_lea.vmem %s0, 2
  %v13 = vld [vmem:[%s12] sm:$0x3]
  %s14 = scalar_lea.vmem %s0, 26
  %v15 = vld [vmem:[%s14] sm:$0x3]
  %v16 = vsub.f32 %v13, %v15
  %s17 = scalar_lea.vmem %s0, 4
  %v18 = vld [vmem:[%s17] sm:$0x3]
  %s19 = scalar_lea.vmem %s0, 28
  %v20 = vld [vmem:[%s19] sm:$0x3]
  %v21 = vsub.f32 %v18, %v20
  %s22 = scalar_lea.vmem %s0, 6
  %v23 = vld [vmem:[%s22] sm:$0x3]
  %v24 = vmul.f32 %v23, %v11
  %s25 = scalar_lea.vmem %s0, 12
  %v26 = vld [vmem:[%s25] sm:$0x3]
  %v27 = vmul.f32 %v26, %v16
  %v28 = vadd.f32 %v24, %v27
  %s29 = scalar_lea.vmem %s0, 18
  %v30 = vld [vmem:[%s29] sm:$0x3]
  %v31 = vmul.f32 %v30, %v21
  %v32 = vadd.f32 %v28, %v31
  %s33 = scalar_lea.vmem %s0, 8
  %v34 = vld [vmem:[%s33] sm:$0x3]
  %v35 = vmul.f32 %v34, %v11
  %s36 = scalar_lea.vmem %s0, 14
  %v37 = vld [vmem:[%s36] sm:$0x3]
  %v38 = vmul.f32 %v37, %v16
  %v39 = vadd.f32 %v35, %v38
  %s40 = scalar_lea.vmem %s0, 20
  %v41 = vld [vmem:[%s40] sm:$0x3]
  %v42 = vmul.f32 %v41, %v21
  %v43 = vadd.f32 %v39, %v42
  %s44 = scalar_lea.vmem %s0, 10
  %v45 = vld [vmem:[%s44] sm:$0x3]
  %v46 = vmul.f32 %v45, %v11
  %s47 = scalar_lea.vmem %s0, 16
  %v48 = vld [vmem:[%s47] sm:$0x3]
  %v49 = vmul.f32 %v48, %v16
  %v50 = vadd.f32 %v46, %v49
  %s51 = scalar_lea.vmem %s0, 22
  %v52 = vld [vmem:[%s51] sm:$0x3]
  %v53 = vmul.f32 %v52, %v21
  %v54 = vadd.f32 %v50, %v53
  %v55 = vsub.f32 0.0, %v54
  %v56 = vrcp.pop %v55
  %s57 = scalar_lea.vmem %s0, 30
  %v58 = vld [vmem:[%s57] sm:$0x3]
  %s59 = scalar_lea.vmem %s0, 32
  %v60 = vld [vmem:[%s59] sm:$0x3]
  %s61 = scalar_lea.vmem %s0, 34
  %v62 = vld [vmem:[%s61] sm:$0x3]
  %s63 = scalar_lea.vmem %s0, 36
  %v64 = vld [vmem:[%s63] sm:$0x3]
  %v65 = vmul.f32 %v58, %v32
  %v66 = vmul.f32 %v65, %v56
  %v67 = vadd.f32 %v66, %v62
  %68 = vst [vmem:[%s1] sm:$0x3] %v67
  %v69 = vmul.f32 %v60, %v43
  %v70 = vmul.f32 %v69, %v56
  %v71 = vsub.f32 %v64, %v70
  %s72 = scalar_lea.vmem %s1, 2
  %73 = vst [vmem:[%s72] sm:$0x3] %v71
  %s74 = scalar_lea.vmem %s1, 4
  %75 = vst [vmem:[%s74] sm:$0x3] %v55
  // Predicated region
  $region6: #{_forward_impl.1} parent=0 // pred_check
    _
  $region7: #{_forward_impl.1} parent=0 // pred_check_branch
    %77 = sbr.rel (0) target = $region9
  $region8: #{_forward_impl.1} parent=0 // pred_region
    _
  $region9: #{_forward_impl.1} parent=0 // pred_fallthru
    _
  // Predicated region
  $region10: #{_forward_impl.1} parent=0 // pred_check
    _
  $region11: #{_forward_impl.1} parent=0 // pred_check_branch
    %79 = sbr.rel (0) target = $region13
  $region12: #{_forward_impl.1} parent=0 // pred_region
    _
  $region13: #{_forward_impl.1} parent=0 // pred_fallthru
    _

</llo_original>
